<compile_context>
chip_gen: v7x
topology: tpu7x:2x2x1
jax: 0.10.0
libtpu: 0.0.40
codegen_flags: <defaults>
</compile_context>

<pallas_src>
import jax
import jax.numpy as jnp
from jax import lax
from jax.experimental import pallas as pl
from jax.experimental.pallas import tpu as pltpu


def _bigram_loss_kernel(idx_ref, tgt_ref, emb_ref, logits_ref, nll_ref,
                        tcol_ref):
    """Row-gather + cross-entropy for one (tm, V) tile (CE vectorized)."""
    tm, V = logits_ref.shape
    base = pl.program_id(0) * tm
    lane = lax.broadcasted_iota(jnp.int32, (1, V), 1)  # hoisted once per tile

    # tm is a small static constant -> unrolled gather loop with static store
    # offsets; the only dynamic index is the token id read from SMEM.
    for i in range(tm):
        tok = idx_ref[base + i]
        tgt = tgt_ref[base + i]

        row = emb_ref[pl.ds(tok, 1), :]                 # (1, V) exact gather
        logits_ref[pl.ds(i, 1), :] = row
        # Target logit for this row (row already in vregs, one masked reduce).
        tcol_ref[pl.ds(i, 1), :] = jnp.sum(
            jnp.where(lane == tgt, row, 0.0), axis=-1, keepdims=True)

    # Vectorized cross entropy over the full (tm, V) tile: logsumexp - tgt.
    rows = logits_ref[...]                                          # (tm, V)
    m = jnp.max(rows, axis=-1, keepdims=True)                       # (tm, 1)
    lse = jnp.log(jnp.sum(jnp.exp(rows - m), axis=-1,
                          keepdims=True)) + m                       # (tm, 1)
    nll_ref[...] = lse - tcol_ref[...]


def _bigram_logits_kernel(idx_ref, emb_ref, logits_ref):
    """Row-gather only (target is None): no softmax / CE work."""
    tm, _ = logits_ref.shape
    base = pl.program_id(0) * tm
    for i in range(tm):
        tok = idx_ref[base + i]
        logits_ref[pl.ds(i, 1), :] = emb_ref[pl.ds(tok, 1), :]


def bigram_forward(idx, embedding_table, target=None, *, tm=8):
    """Pallas equivalent of BigramLanguageModel.forward.

    idx: [B, T] int, embedding_table: [V, V] float32, target: [B, T] int or None.
    Returns (logits, loss):
      - target is None: logits [B, T, V], loss None
      - else:           logits [B*T, V], loss scalar float32
    """
    B, T = idx.shape
    V = embedding_table.shape[0]
    N = B * T

    # tm rows per grid step.  Keep it a multiple of 8 (sublane) and modest so
    # the unrolled gather loop stays small; raise for large N within the VMEM
    # budget (note v7x has 64 MiB VMEM vs 128 MiB on v5e/v6e).
    n_tiles = pl.cdiv(N, tm)
    n_pad = n_tiles * tm

    idx_flat = jnp.zeros((n_pad,), jnp.int32).at[:N].set(
        idx.reshape(-1).astype(jnp.int32))
    emb = embedding_table.astype(jnp.float32)

    # TODO(synk): for very large V the full (V, V) table no longer fits VMEM;
    # switch the table in_spec to an HBM pl.Element row gather in that regime.

    if target is None:
        logits_pad = pl.pallas_call(
            _bigram_logits_kernel,
            out_shape=jax.ShapeDtypeStruct((n_pad, V), jnp.float32),
            grid_spec=pltpu.PrefetchScalarGridSpec(
                num_scalar_prefetch=1,
                grid=(n_tiles,),
                in_specs=[pl.BlockSpec((V, V), lambda i, idx_s: (0, 0))],
                out_specs=pl.BlockSpec((tm, V), lambda i, idx_s: (i, 0)),
            ),
            compiler_params=pltpu.CompilerParams(
                dimension_semantics=("parallel",)),
        )(idx_flat, emb)
        return logits_pad[:N].reshape(B, T, V), None

    tgt_flat = jnp.zeros((n_pad,), jnp.int32).at[:N].set(
        target.reshape(-1).astype(jnp.int32))

    logits_pad, nll_pad = pl.pallas_call(
        _bigram_loss_kernel,
        out_shape=(
            jax.ShapeDtypeStruct((n_pad, V), jnp.float32),
            jax.ShapeDtypeStruct((n_pad, 1), jnp.float32),
        ),
        grid_spec=pltpu.PrefetchScalarGridSpec(
            num_scalar_prefetch=2,
            grid=(n_tiles,),
            in_specs=[pl.BlockSpec((V, V), lambda i, idx_s, tgt_s: (0, 0))],
            out_specs=(
                pl.BlockSpec((tm, V), lambda i, idx_s, tgt_s: (i, 0)),
                pl.BlockSpec((tm, 1), lambda i, idx_s, tgt_s: (i, 0)),
            ),
            scratch_shapes=[pltpu.VMEM((tm, 1), jnp.float32)],
        ),
        compiler_params=pltpu.CompilerParams(
            dimension_semantics=("parallel",)),
    )(idx_flat, tgt_flat, emb)

    logits = logits_pad[:N]
    # Padded rows are excluded here; mean over the true N rows (= F.cross_entropy).
    loss = jnp.sum(nll_pad[:N, 0]) / N
    return logits, loss


if __name__ == "__main__":
    vocab_size = 128
    B, T = 2, 8

    key = jax.random.PRNGKey(0)
    k_emb, k_idx, k_tgt = jax.random.split(key, 3)

    # Deterministic parameter init (nn.Embedding(vocab_size, vocab_size) ~ N(0,1)).
    embedding_table = jax.random.normal(k_emb, (vocab_size, vocab_size),
                                        dtype=jnp.float32)
    idx = jax.random.randint(k_idx, (B, T), 0, vocab_size, dtype=jnp.int32)
    target = jax.random.randint(k_tgt, (B, T), 0, vocab_size, dtype=jnp.int32)

    # --- training-style call (with target) ---
    logits, loss = bigram_forward(idx, embedding_table, target)
    logits = jax.block_until_ready(logits)
    loss = jax.block_until_ready(loss)

    # Reference in plain JAX (embedding gather + cross entropy).
    ref_logits = embedding_table[idx.reshape(-1)]
    ref_lse = jax.scipy.special.logsumexp(ref_logits, axis=-1)
    ref_loss = jnp.mean(
        ref_lse - ref_logits[jnp.arange(B * T), target.reshape(-1)])
    assert logits.shape == (B * T, vocab_size)
    assert jnp.allclose(logits, ref_logits, atol=1e-5)
    assert jnp.allclose(loss, ref_loss, atol=1e-5)

    # --- inference-style call (target is None) ---
    logits_inf, loss_inf = bigram_forward(idx, embedding_table, None)
    logits_inf = jax.block_until_ready(logits_inf)
    assert loss_inf is None
    assert logits_inf.shape == (B, T, vocab_size)
    assert jnp.allclose(logits_inf.reshape(B * T, vocab_size), ref_logits,
                        atol=1e-5)

    # TODO(synk): `generate` (multinomial sampling loop) is host-side control
    # flow and not implemented as a kernel.
    print("KERNEL_OK")
</pallas_src>

<mosaic_0001>
module attributes {stable_mosaic.version = 11 : i64} {
  func.func @_bigram_loss_kernel(%arg0: i32, %arg1: memref<16xi32, #tpu.memory_space<smem>>, %arg2: memref<16xi32, #tpu.memory_space<smem>>, %arg3: memref<128x128xf32, #tpu.memory_space<vmem>>, %arg4: memref<8x128xf32, #tpu.memory_space<vmem>>, %arg5: memref<8x1xf32, #tpu.memory_space<vmem>>, %arg6: memref<8x1xf32, #tpu.memory_space<vmem>>) attributes {dimension_semantics = [#tpu.dimension_semantics<parallel>], iteration_bounds = array<i64: 2>, scalar_prefetch = 2 : i64, scratch_operands = 1 : i64, tpu.core_type = #tpu.core_type<tc>, window_params = [{pipeline_mode = #tpu.pipeline_mode<synchronous>, transform_indices = @transform_0, window_bounds = array<i64: 128, 128>}, {transform_indices = @transform_1, window_bounds = array<i64: 8, 128>}, {transform_indices = @transform_2, window_bounds = array<i64: 8, 1>}]} {
    %c8_i32 = arith.constant 8 : i32
    %0 = arith.muli %arg0, %c8_i32 : i32
    %1 = tpu.iota {dimensions = array<i32: 1>} : vector<1x128xi32>
    %c0_i32 = arith.constant 0 : i32
    %2 = arith.addi %0, %c0_i32 : i32
    %3 = arith.index_cast %2 : i32 to index
    %4 = memref.load %arg1[%3] : memref<16xi32, #tpu.memory_space<smem>>
    %c0_i32_0 = arith.constant 0 : i32
    %5 = arith.addi %0, %c0_i32_0 : i32
    %6 = arith.index_cast %5 : i32 to index
    %7 = memref.load %arg2[%6] : memref<16xi32, #tpu.memory_space<smem>>
    %8 = arith.index_cast %4 : i32 to index
    %c0 = arith.constant 0 : index
    %9 = vector.load %arg3[%8, %c0] : memref<128x128xf32, #tpu.memory_space<vmem>>, vector<1x128xf32>
    %c0_1 = arith.constant 0 : index
    %c0_2 = arith.constant 0 : index
    %10 = vector.load %arg4[%c0_1, %c0_2] : memref<8x128xf32, #tpu.memory_space<vmem>>, vector<1x128xf32>
    tpu.vector_store %arg4[%c0_1, %c0_2], %9 {strides = array<i32>} : memref<8x128xf32, #tpu.memory_space<vmem>>, vector<1x128xf32>,
    %11 = vector.broadcast %7 : i32 to vector<1x128xi32>
    %12 = arith.cmpi eq, %1, %11 : vector<1x128xi32>
    %cst = arith.constant 0.000000e+00 : f32
    %13 = vector.broadcast %cst : f32 to vector<1x128xf32>
    %14 = arith.select %12, %9, %13 : vector<1x128xi1>, vector<1x128xf32>
    %cst_3 = arith.constant dense<0.000000e+00> : vector<1xf32>
    %15 = vector.multi_reduction <add>, %14, %cst_3 [1] : vector<1x128xf32> to vector<1xf32>
    %16 = vector.shape_cast %15 : vector<1xf32> to vector<1x1xf32>
    %c0_4 = arith.constant 0 : index
    %c0_5 = arith.constant 0 : index
    %17 = vector.load %arg6[%c0_4, %c0_5] : memref<8x1xf32, #tpu.memory_space<vmem>>, vector<1x1xf32>
    tpu.vector_store %arg6[%c0_4, %c0_5], %16 {strides = array<i32>} : memref<8x1xf32, #tpu.memory_space<vmem>>, vector<1x1xf32>,
    %c1_i32 = arith.constant 1 : i32
    %18 = arith.addi %0, %c1_i32 : i32
    %19 = arith.index_cast %18 : i32 to index
    %20 = memref.load %arg1[%19] : memref<16xi32, #tpu.memory_space<smem>>
    %c1_i32_6 = arith.constant 1 : i32
    %21 = arith.addi %0, %c1_i32_6 : i32
    %22 = arith.index_cast %21 : i32 to index
    %23 = memref.load %arg2[%22] : memref<16xi32, #tpu.memory_space<smem>>
    %24 = arith.index_cast %20 : i32 to index
    %c0_7 = arith.constant 0 : index
    %25 = vector.load %arg3[%24, %c0_7] : memref<128x128xf32, #tpu.memory_space<vmem>>, vector<1x128xf32>
    %c1 = arith.constant 1 : index
    %c0_8 = arith.constant 0 : index
    %26 = vector.load %arg4[%c1, %c0_8] : memref<8x128xf32, #tpu.memory_space<vmem>>, vector<1x128xf32>
    tpu.vector_store %arg4[%c1, %c0_8], %25 {strides = array<i32>} : memref<8x128xf32, #tpu.memory_space<vmem>>, vector<1x128xf32>,
    %27 = vector.broadcast %23 : i32 to vector<1x128xi32>
    %28 = arith.cmpi eq, %1, %27 : vector<1x128xi32>
    %cst_9 = arith.constant 0.000000e+00 : f32
    %29 = vector.broadcast %cst_9 : f32 to vector<1x128xf32>
    %30 = arith.select %28, %25, %29 : vector<1x128xi1>, vector<1x128xf32>
    %cst_10 = arith.constant dense<0.000000e+00> : vector<1xf32>
    %31 = vector.multi_reduction <add>, %30, %cst_10 [1] : vector<1x128xf32> to vector<1xf32>
    %32 = vector.shape_cast %31 : vector<1xf32> to vector<1x1xf32>
    %c1_11 = arith.constant 1 : index
    %c0_12 = arith.constant 0 : index
    %33 = vector.load %arg6[%c1_11, %c0_12] : memref<8x1xf32, #tpu.memory_space<vmem>>, vector<1x1xf32>
    tpu.vector_store %arg6[%c1_11, %c0_12], %32 {strides = array<i32>} : memref<8x1xf32, #tpu.memory_space<vmem>>, vector<1x1xf32>,
    %c2_i32 = arith.constant 2 : i32
    %34 = arith.addi %0, %c2_i32 : i32
    %35 = arith.index_cast %34 : i32 to index
    %36 = memref.load %arg1[%35] : memref<16xi32, #tpu.memory_space<smem>>
    %c2_i32_13 = arith.constant 2 : i32
    %37 = arith.addi %0, %c2_i32_13 : i32
    %38 = arith.index_cast %37 : i32 to index
    %39 = memref.load %arg2[%38] : memref<16xi32, #tpu.memory_space<smem>>
    %40 = arith.index_cast %36 : i32 to index
    %c0_14 = arith.constant 0 : index
    %41 = vector.load %arg3[%40, %c0_14] : memref<128x128xf32, #tpu.memory_space<vmem>>, vector<1x128xf32>
    %c2 = arith.constant 2 : index
    %c0_15 = arith.constant 0 : index
    %42 = vector.load %arg4[%c2, %c0_15] : memref<8x128xf32, #tpu.memory_space<vmem>>, vector<1x128xf32>
    tpu.vector_store %arg4[%c2, %c0_15], %41 {strides = array<i32>} : memref<8x128xf32, #tpu.memory_space<vmem>>, vector<1x128xf32>,
    %43 = vector.broadcast %39 : i32 to vector<1x128xi32>
    %44 = arith.cmpi eq, %1, %43 : vector<1x128xi32>
    %cst_16 = arith.constant 0.000000e+00 : f32
    %45 = vector.broadcast %cst_16 : f32 to vector<1x128xf32>
    %46 = arith.select %44, %41, %45 : vector<1x128xi1>, vector<1x128xf32>
    %cst_17 = arith.constant dense<0.000000e+00> : vector<1xf32>
    %47 = vector.multi_reduction <add>, %46, %cst_17 [1] : vector<1x128xf32> to vector<1xf32>
    %48 = vector.shape_cast %47 : vector<1xf32> to vector<1x1xf32>
    %c2_18 = arith.constant 2 : index
    %c0_19 = arith.constant 0 : index
    %49 = vector.load %arg6[%c2_18, %c0_19] : memref<8x1xf32, #tpu.memory_space<vmem>>, vector<1x1xf32>
    tpu.vector_store %arg6[%c2_18, %c0_19], %48 {strides = array<i32>} : memref<8x1xf32, #tpu.memory_space<vmem>>, vector<1x1xf32>,
    %c3_i32 = arith.constant 3 : i32
    %50 = arith.addi %0, %c3_i32 : i32
    %51 = arith.index_cast %50 : i32 to index
    %52 = memref.load %arg1[%51] : memref<16xi32, #tpu.memory_space<smem>>
    %c3_i32_20 = arith.constant 3 : i32
    %53 = arith.addi %0, %c3_i32_20 : i32
    %54 = arith.index_cast %53 : i32 to index
    %55 = memref.load %arg2[%54] : memref<16xi32, #tpu.memory_space<smem>>
    %56 = arith.index_cast %52 : i32 to index
    %c0_21 = arith.constant 0 : index
    %57 = vector.load %arg3[%56, %c0_21] : memref<128x128xf32, #tpu.memory_space<vmem>>, vector<1x128xf32>
    %c3 = arith.constant 3 : index
    %c0_22 = arith.constant 0 : index
    %58 = vector.load %arg4[%c3, %c0_22] : memref<8x128xf32, #tpu.memory_space<vmem>>, vector<1x128xf32>
    tpu.vector_store %arg4[%c3, %c0_22], %57 {strides = array<i32>} : memref<8x128xf32, #tpu.memory_space<vmem>>, vector<1x128xf32>,
    %59 = vector.broadcast %55 : i32 to vector<1x128xi32>
    %60 = arith.cmpi eq, %1, %59 : vector<1x128xi32>
    %cst_23 = arith.constant 0.000000e+00 : f32
    %61 = vector.broadcast %cst_23 : f32 to vector<1x128xf32>
    %62 = arith.select %60, %57, %61 : vector<1x128xi1>, vector<1x128xf32>
    %cst_24 = arith.constant dense<0.000000e+00> : vector<1xf32>
    %63 = vector.multi_reduction <add>, %62, %cst_24 [1] : vector<1x128xf32> to vector<1xf32>
    %64 = vector.shape_cast %63 : vector<1xf32> to vector<1x1xf32>
    %c3_25 = arith.constant 3 : index
    %c0_26 = arith.constant 0 : index
    %65 = vector.load %arg6[%c3_25, %c0_26] : memref<8x1xf32, #tpu.memory_space<vmem>>, vector<1x1xf32>
    tpu.vector_store %arg6[%c3_25, %c0_26], %64 {strides = array<i32>} : memref<8x1xf32, #tpu.memory_space<vmem>>, vector<1x1xf32>,
    %c4_i32 = arith.constant 4 : i32
    %66 = arith.addi %0, %c4_i32 : i32
    %67 = arith.index_cast %66 : i32 to index
    %68 = memref.load %arg1[%67] : memref<16xi32, #tpu.memory_space<smem>>
    %c4_i32_27 = arith.constant 4 : i32
    %69 = arith.addi %0, %c4_i32_27 : i32
    %70 = arith.index_cast %69 : i32 to index
    %71 = memref.load %arg2[%70] : memref<16xi32, #tpu.memory_space<smem>>
    %72 = arith.index_cast %68 : i32 to index
    %c0_28 = arith.constant 0 : index
    %73 = vector.load %arg3[%72, %c0_28] : memref<128x128xf32, #tpu.memory_space<vmem>>, vector<1x128xf32>
    %c4 = arith.constant 4 : index
    %c0_29 = arith.constant 0 : index
    %74 = vector.load %arg4[%c4, %c0_29] : memref<8x128xf32, #tpu.memory_space<vmem>>, vector<1x128xf32>
    tpu.vector_store %arg4[%c4, %c0_29], %73 {strides = array<i32>} : memref<8x128xf32, #tpu.memory_space<vmem>>, vector<1x128xf32>,
    %75 = vector.broadcast %71 : i32 to vector<1x128xi32>
    %76 = arith.cmpi eq, %1, %75 : vector<1x128xi32>
    %cst_30 = arith.constant 0.000000e+00 : f32
    %77 = vector.broadcast %cst_30 : f32 to vector<1x128xf32>
    %78 = arith.select %76, %73, %77 : vector<1x128xi1>, vector<1x128xf32>
    %cst_31 = arith.constant dense<0.000000e+00> : vector<1xf32>
    %79 = vector.multi_reduction <add>, %78, %cst_31 [1] : vector<1x128xf32> to vector<1xf32>
    %80 = vector.shape_cast %79 : vector<1xf32> to vector<1x1xf32>
    %c4_32 = arith.constant 4 : index
    %c0_33 = arith.constant 0 : index
    %81 = vector.load %arg6[%c4_32, %c0_33] : memref<8x1xf32, #tpu.memory_space<vmem>>, vector<1x1xf32>
    tpu.vector_store %arg6[%c4_32, %c0_33], %80 {strides = array<i32>} : memref<8x1xf32, #tpu.memory_space<vmem>>, vector<1x1xf32>,
    %c5_i32 = arith.constant 5 : i32
    %82 = arith.addi %0, %c5_i32 : i32
    %83 = arith.index_cast %82 : i32 to index
    %84 = memref.load %arg1[%83] : memref<16xi32, #tpu.memory_space<smem>>
    %c5_i32_34 = arith.constant 5 : i32
    %85 = arith.addi %0, %c5_i32_34 : i32
    %86 = arith.index_cast %85 : i32 to index
    %87 = memref.load %arg2[%86] : memref<16xi32, #tpu.memory_space<smem>>
    %88 = arith.index_cast %84 : i32 to index
    %c0_35 = arith.constant 0 : index
    %89 = vector.load %arg3[%88, %c0_35] : memref<128x128xf32, #tpu.memory_space<vmem>>, vector<1x128xf32>
    %c5 = arith.constant 5 : index
    %c0_36 = arith.constant 0 : index
    %90 = vector.load %arg4[%c5, %c0_36] : memref<8x128xf32, #tpu.memory_space<vmem>>, vector<1x128xf32>
    tpu.vector_store %arg4[%c5, %c0_36], %89 {strides = array<i32>} : memref<8x128xf32, #tpu.memory_space<vmem>>, vector<1x128xf32>,
    %91 = vector.broadcast %87 : i32 to vector<1x128xi32>
    %92 = arith.cmpi eq, %1, %91 : vector<1x128xi32>
    %cst_37 = arith.constant 0.000000e+00 : f32
    %93 = vector.broadcast %cst_37 : f32 to vector<1x128xf32>
    %94 = arith.select %92, %89, %93 : vector<1x128xi1>, vector<1x128xf32>
    %cst_38 = arith.constant dense<0.000000e+00> : vector<1xf32>
    %95 = vector.multi_reduction <add>, %94, %cst_38 [1] : vector<1x128xf32> to vector<1xf32>
    %96 = vector.shape_cast %95 : vector<1xf32> to vector<1x1xf32>
    %c5_39 = arith.constant 5 : index
    %c0_40 = arith.constant 0 : index
    %97 = vector.load %arg6[%c5_39, %c0_40] : memref<8x1xf32, #tpu.memory_space<vmem>>, vector<1x1xf32>
    tpu.vector_store %arg6[%c5_39, %c0_40], %96 {strides = array<i32>} : memref<8x1xf32, #tpu.memory_space<vmem>>, vector<1x1xf32>,
    %c6_i32 = arith.constant 6 : i32
    %98 = arith.addi %0, %c6_i32 : i32
    %99 = arith.index_cast %98 : i32 to index
    %100 = memref.load %arg1[%99] : memref<16xi32, #tpu.memory_space<smem>>
    %c6_i32_41 = arith.constant 6 : i32
    %101 = arith.addi %0, %c6_i32_41 : i32
    %102 = arith.index_cast %101 : i32 to index
    %103 = memref.load %arg2[%102] : memref<16xi32, #tpu.memory_space<smem>>
    %104 = arith.index_cast %100 : i32 to index
    %c0_42 = arith.constant 0 : index
    %105 = vector.load %arg3[%104, %c0_42] : memref<128x128xf32, #tpu.memory_space<vmem>>, vector<1x128xf32>
    %c6 = arith.constant 6 : index
    %c0_43 = arith.constant 0 : index
    %106 = vector.load %arg4[%c6, %c0_43] : memref<8x128xf32, #tpu.memory_space<vmem>>, vector<1x128xf32>
    tpu.vector_store %arg4[%c6, %c0_43], %105 {strides = array<i32>} : memref<8x128xf32, #tpu.memory_space<vmem>>, vector<1x128xf32>,
    %107 = vector.broadcast %103 : i32 to vector<1x128xi32>
    %108 = arith.cmpi eq, %1, %107 : vector<1x128xi32>
    %cst_44 = arith.constant 0.000000e+00 : f32
    %109 = vector.broadcast %cst_44 : f32 to vector<1x128xf32>
    %110 = arith.select %108, %105, %109 : vector<1x128xi1>, vector<1x128xf32>
    %cst_45 = arith.constant dense<0.000000e+00> : vector<1xf32>
    %111 = vector.multi_reduction <add>, %110, %cst_45 [1] : vector<1x128xf32> to vector<1xf32>
    %112 = vector.shape_cast %111 : vector<1xf32> to vector<1x1xf32>
    %c6_46 = arith.constant 6 : index
    %c0_47 = arith.constant 0 : index
    %113 = vector.load %arg6[%c6_46, %c0_47] : memref<8x1xf32, #tpu.memory_space<vmem>>, vector<1x1xf32>
    tpu.vector_store %arg6[%c6_46, %c0_47], %112 {strides = array<i32>} : memref<8x1xf32, #tpu.memory_space<vmem>>, vector<1x1xf32>,
    %c7_i32 = arith.constant 7 : i32
    %114 = arith.addi %0, %c7_i32 : i32
    %115 = arith.index_cast %114 : i32 to index
    %116 = memref.load %arg1[%115] : memref<16xi32, #tpu.memory_space<smem>>
    %c7_i32_48 = arith.constant 7 : i32
    %117 = arith.addi %0, %c7_i32_48 : i32
    %118 = arith.index_cast %117 : i32 to index
    %119 = memref.load %arg2[%118] : memref<16xi32, #tpu.memory_space<smem>>
    %120 = arith.index_cast %116 : i32 to index
    %c0_49 = arith.constant 0 : index
    %121 = vector.load %arg3[%120, %c0_49] : memref<128x128xf32, #tpu.memory_space<vmem>>, vector<1x128xf32>
    %c7 = arith.constant 7 : index
    %c0_50 = arith.constant 0 : index
    %122 = vector.load %arg4[%c7, %c0_50] : memref<8x128xf32, #tpu.memory_space<vmem>>, vector<1x128xf32>
    tpu.vector_store %arg4[%c7, %c0_50], %121 {strides = array<i32>} : memref<8x128xf32, #tpu.memory_space<vmem>>, vector<1x128xf32>,
    %123 = vector.broadcast %119 : i32 to vector<1x128xi32>
    %124 = arith.cmpi eq, %1, %123 : vector<1x128xi32>
    %cst_51 = arith.constant 0.000000e+00 : f32
    %125 = vector.broadcast %cst_51 : f32 to vector<1x128xf32>
    %126 = arith.select %124, %121, %125 : vector<1x128xi1>, vector<1x128xf32>
    %cst_52 = arith.constant dense<0.000000e+00> : vector<1xf32>
    %127 = vector.multi_reduction <add>, %126, %cst_52 [1] : vector<1x128xf32> to vector<1xf32>
    %128 = vector.shape_cast %127 : vector<1xf32> to vector<1x1xf32>
    %c7_53 = arith.constant 7 : index
    %c0_54 = arith.constant 0 : index
    %129 = vector.load %arg6[%c7_53, %c0_54] : memref<8x1xf32, #tpu.memory_space<vmem>>, vector<1x1xf32>
    tpu.vector_store %arg6[%c7_53, %c0_54], %128 {strides = array<i32>} : memref<8x1xf32, #tpu.memory_space<vmem>>, vector<1x1xf32>,
    %c0_55 = arith.constant 0 : index
    %c0_56 = arith.constant 0 : index
    %130 = vector.load %arg4[%c0_55, %c0_56] : memref<8x128xf32, #tpu.memory_space<vmem>>, vector<8x128xf32>
    %cst_57 = arith.constant dense<0xFF800000> : vector<8xf32>
    %131 = vector.multi_reduction <maximumf>, %130, %cst_57 [1] : vector<8x128xf32> to vector<8xf32>
    %132 = vector.shape_cast %131 : vector<8xf32> to vector<8x1xf32>
    %133 = vector.broadcast %132 : vector<8x1xf32> to vector<8x128xf32>
    %134 = arith.subf %130, %133 : vector<8x128xf32>
    %135 = math.exp %134 : vector<8x128xf32>
    %cst_58 = arith.constant dense<0.000000e+00> : vector<8xf32>
    %136 = vector.multi_reduction <add>, %135, %cst_58 [1] : vector<8x128xf32> to vector<8xf32>
    %137 = vector.shape_cast %136 : vector<8xf32> to vector<8x1xf32>
    %138 = math.log %137 : vector<8x1xf32>
    %139 = arith.addf %138, %132 : vector<8x1xf32>
    %c0_59 = arith.constant 0 : index
    %c0_60 = arith.constant 0 : index
    %140 = vector.load %arg6[%c0_59, %c0_60] : memref<8x1xf32, #tpu.memory_space<vmem>>, vector<8x1xf32>
    %141 = arith.subf %139, %140 : vector<8x1xf32>
    %c0_61 = arith.constant 0 : index
    %c0_62 = arith.constant 0 : index
    %142 = vector.load %arg5[%c0_61, %c0_62] : memref<8x1xf32, #tpu.memory_space<vmem>>, vector<8x1xf32>
    tpu.vector_store %arg5[%c0_61, %c0_62], %141 {strides = array<i32>} : memref<8x1xf32, #tpu.memory_space<vmem>>, vector<8x1xf32>,
    return
  }
  func.func @transform_0(%arg0: i32, %arg1: memref<16xi32, #tpu.memory_space<smem>>, %arg2: memref<16xi32, #tpu.memory_space<smem>>) -> (i32, i32) {
    %c0_i32 = arith.constant 0 : i32
    %c0_i32_0 = arith.constant 0 : i32
    %c0_i32_1 = arith.constant 0 : i32
    return %c0_i32, %c0_i32_0 : i32, i32
  }
  func.func @transform_1(%arg0: i32, %arg1: memref<16xi32, #tpu.memory_space<smem>>, %arg2: memref<16xi32, #tpu.memory_space<smem>>) -> (i32, i32) {
    %c0_i32 = arith.constant 0 : i32
    %c0_i32_0 = arith.constant 0 : i32
    return %arg0, %c0_i32 : i32, i32
  }
  func.func @transform_2(%arg0: i32, %arg1: memref<16xi32, #tpu.memory_space<smem>>, %arg2: memref<16xi32, #tpu.memory_space<smem>>) -> (i32, i32) {
    %c0_i32 = arith.constant 0 : i32
    %c0_i32_0 = arith.constant 0 : i32
    return %arg0, %c0_i32 : i32, i32
  }
}

</mosaic_0001>

<llo_original>
// kernel: tpu_custom_call.1
$region0: #{tpu_custom_call.1}
  #allocation0 [shape = 'u32[]', space=smem, size = 0x4, offset = 0x4, fixed_abs, tag = 'smem constant byte address 0x4 - core index']
  #allocation1 [shape = 'u32[144,128]{1,0:T(1,128)}', space=vmem, size = 0x12000, scoped, tag = 'internal scratch']
  #allocation2 [shape = 'f32[8,1]{1,0:T(8,128)}', space=vmem, size = 0x1000, scoped, tag = 'scratch operand']
  #allocation3 [shape = 's32[1]{0}', space=sflag, size = 0x4, scoped, tag = 'scoped memory for tpu_custom_call.1']
  #allocation4 [shape = 'u8[512]{0}', space=smem, size = 0x200, scoped, tag = 'prefetched SMEM operand 0']
  #allocation5 [shape = 'u8[512]{0}', space=smem, size = 0x200, scoped, tag = 'prefetched SMEM operand 1']
  %s0 = inlined_call_operand.hbm [shape: s32[16], index: 0, kind: input, shape index: {}]
  %s1 = inlined_call_operand.vmem [shape: s32[16], index: 1, kind: input, shape index: {}]
  %s2 = inlined_call_operand.hbm [shape: f32[128,128], index: 2, kind: input, shape index: {}]
  %s3 = inlined_call_operand.hbm [shape: f32[16,128], index: 3, kind: output, shape index: {0}]
  %s4 = inlined_call_operand.vmem [shape: f32[16,1], index: 4, kind: output, shape index: {1}]
  %5 = xla_tuple %s3, %s4
  %s6 = sld [smem:[#allocation0]]
  $region49: #{tpu_custom_call.1} parent=0
    _
  %s8 = ssub.s32 1, %s6
  %s9 = scalar_select 0, %s8, %s6
  %11 = dma.hbm_to_smem %s0, 16, [#allocation4], [#allocation3]
  %s12 = sshll.u32 %s1, 4
  %s13 = int_to_ptr.vmem [resolvable:$true] %s12
  %15 = dma.vmem_to_smem %s13, 16, [#allocation5], [#allocation3]
  %16 = dma.done [#allocation3], 32
  %17 = sfence
  $region1: #{tpu_custom_call.1} parent=0
    #allocation6 [shape = 'u8[65536]{0}', space=vmem, size = 0x10000, scoped, tag = 'input window, operand 2, single buffered']
    #allocation7 [shape = 's32[2]{0}', space=sflag, size = 0x8, scoped, tag = 'scoped memory for tpu_custom_call.1']
    #allocation8 [shape = 's32[2]{0}', space=sflag, size = 0x8, scoped, tag = 'scoped memory for tpu_custom_call.1']
    #allocation9 [shape = 'u8[8192]{0}', space=vmem, size = 0x2000, scoped, tag = 'output window, operand 0']
    %18 = vsyncpa [#allocation7], 0
    %19 = vsyncpa [#allocation8], 0
    %s20 = scalar_lea.sflag [#allocation8], 1
    %21 = vsyncpa %s20, 0
    loop: start=0, step=1, limit=4
    $region2: #{tpu_custom_call.1} parent=1 // loop_pre_header
      _
    $region3: #{tpu_custom_call.1} parent=1 // loop_header
      %s23 = sphi 0, %s27
      %p24 = scmp.ge.s32.totalorder %s23, 4
      %s31 = sphi 0, %s31
      %s33 = sphi 0, %s31
      %s34 = sphi 0, %s33
      %s48 = sphi 0, %s34
      %s54 = sphi 0, %s56
      %s57 = sphi 0, %s54
      %s58 = sphi 0, %s57
      %s74 = sphi 0, %s58
      %s80 = sphi 0, %s82
      %s83 = sphi 0, %s80
      %s84 = sphi 0, %s83
      %s100 = sphi 0, %s84
    $region4: #{tpu_custom_call.1} parent=1 // loop_header_branch
      %26 = sbr.rel (%p24) target = $region8
    $region5: #{tpu_custom_call.1} parent=1 // loop_body
      %s28 = ssub.s32 %s23, 1
      %s29 = ssub.s32 %s23, 2
      %s30 = sadd.s32 %s23, 1
      %s32 = sadd.s32 %s31, 1
      %p35 = scmp.eq.s32.totalorder %s23, 1
      %p36 = scmp.ne.s32.totalorder %s31, %s33
      %p37 = scmp.eq.s32.totalorder %s23, 0
      %p38 = por %p36, %p37
      %p39 = scmp.ne.s32.totalorder %s31, %s33
      %p40 = scmp.eq.s32.totalorder %s28, 1
      %p41 = por %p39, %p40
      %p42 = scmp.ne.s32.totalorder %s33, %s34
      %p43 = scmp.eq.s32.totalorder %s28, 0
      %p44 = por %p42, %p43
      %p45 = scmp.ne.s32.totalorder %s33, %s34
      %p46 = scmp.eq.s32.totalorder %s29, 1
      %p47 = por %p45, %p46
      %p49 = scmp.ne.s32.totalorder %s34, %s48
      %p50 = scmp.eq.s32.totalorder %s29, 0
      %p51 = por %p49, %p50
      %s52 = ssub.s32 %s23, %s30
      %p53 = scmp.eq.s32.totalorder %s52, 0
      %s55 = sadd.s32 %s54, 1
      %s56 = scalar_select %p53, %s54, %s55
      %p59 = pneg %p53
      %p60 = scmp.eq.s32.totalorder %s23, 1
      %p61 = por %p59, %p60
      %p62 = scmp.ne.s32.totalorder %s54, %s57
      %p63 = scmp.eq.s32.totalorder %s23, 0
      %p64 = por %p62, %p63
      %p65 = scmp.ne.s32.totalorder %s54, %s57
      %p66 = scmp.eq.s32.totalorder %s28, 1
      %p67 = por %p65, %p66
      %p68 = scmp.ne.s32.totalorder %s57, %s58
      %p69 = scmp.eq.s32.totalorder %s28, 0
      %p70 = por %p68, %p69
      %p71 = scmp.ne.s32.totalorder %s57, %s58
      %p72 = scmp.eq.s32.totalorder %s29, 1
      %p73 = por %p71, %p72
      %p75 = scmp.ne.s32.totalorder %s58, %s74
      %p76 = scmp.eq.s32.totalorder %s29, 0
      %p77 = por %p75, %p76
      %s78 = ssub.s32 %s23, %s30
      %p79 = scmp.eq.s32.totalorder %s78, 0
      %s81 = sadd.s32 %s80, 1
      %s82 = scalar_select %p79, %s80, %s81
      %p85 = pneg %p79
      %p86 = scmp.eq.s32.totalorder %s23, 1
      %p87 = por %p85, %p86
      %p88 = scmp.ne.s32.totalorder %s80, %s83
      %p89 = scmp.eq.s32.totalorder %s23, 0
      %p90 = por %p88, %p89
      %p91 = scmp.ne.s32.totalorder %s80, %s83
      %p92 = scmp.eq.s32.totalorder %s28, 1
      %p93 = por %p91, %p92
      %p94 = scmp.ne.s32.totalorder %s83, %s84
      %p95 = scmp.eq.s32.totalorder %s28, 0
      %p96 = por %p94, %p95
      %p97 = scmp.ne.s32.totalorder %s83, %s84
      %p98 = scmp.eq.s32.totalorder %s29, 1
      %p99 = por %p97, %p98
      %p101 = scmp.ne.s32.totalorder %s84, %s100
      %p102 = scmp.eq.s32.totalorder %s29, 0
      %p103 = por %p101, %p102
      %p104 = scmp.le.s32.totalorder 1, %s23
      %p105 = scmp.lt.s32.totalorder %s23, 3
      %p106 = pnand %p104, %p105
      %p107 = pneg %p106
      // Predicated region
      $region9: #{tpu_custom_call.1} parent=5 // pred_check
        _
      $region10: #{tpu_custom_call.1} parent=5 // pred_check_branch
        %109 = sbr.rel (%p106) target = $region12
      $region11: #{tpu_custom_call.1} parent=5 // pred_region
        %s110 = ssub.s32 %s23, 1
        // Predicated region
        $region13: #{tpu_custom_call.1} parent=11 // pred_check
          %p111 = pneg %p44
        $region14: #{tpu_custom_call.1} parent=11 // pred_check_branch
          %113 = sbr.rel (%p111) target = $region16
        $region15: #{tpu_custom_call.1} parent=11 // pred_region
          %s115 = ssub.s32 2048, 2048
          %116 = vsyncadd [#allocation7], %s115
          %s117 = sshll.u32 [#allocation6], 4
          %s118 = int_to_ptr.vmem [resolvable:$true] %s117
          %123 = dma.hbm_to_vmem [thread:$0]  %s2, 2048, %s118, [#allocation7], 128, 128, 8
        $region16: #{tpu_custom_call.1} parent=11 // pred_fallthru
          _
      $region12: #{tpu_custom_call.1} parent=5 // pred_fallthru
        _
      %p124 = scmp.lt.s32.totalorder %s23, 2
      // Predicated region
      $region17: #{tpu_custom_call.1} parent=5 // pred_check
        %p125 = pneg %p124
      $region18: #{tpu_custom_call.1} parent=5 // pred_check_branch
        %127 = sbr.rel (%p125) target = $region20
      $region19: #{tpu_custom_call.1} parent=5 // pred_region
        _
      $region20: #{tpu_custom_call.1} parent=5 // pred_fallthru
        _
      %p128 = scmp.le.s32.totalorder 1, %s23
      %p129 = scmp.lt.s32.totalorder %s23, 3
      %p130 = pnand %p128, %p129
      %p131 = pneg %p130
      // Predicated region
      $region21: #{tpu_custom_call.1} parent=5 // pred_check
        _
      $region22: #{tpu_custom_call.1} parent=5 // pred_check_branch
        %133 = sbr.rel (%p130) target = $region24
      $region23: #{tpu_custom_call.1} parent=5 // pred_region
        %s134 = ssub.s32 %s23, 1
        // Predicated region
        $region25: #{tpu_custom_call.1} parent=23 // pred_check
          %p135 = pneg %p44
        $region26: #{tpu_custom_call.1} parent=23 // pred_check_branch
          %137 = sbr.rel (%p135) target = $region28
        $region27: #{tpu_custom_call.1} parent=23 // pred_region
          %138 = dma.done [#allocation7], 2048
        $region28: #{tpu_custom_call.1} parent=23 // pred_fallthru
          _
        %p139 = pneg %p44
        %p140 = pneg %p41
        %p141 = pneg %p70
        %p142 = pneg %p67
        %s143 = sand.u32 %s57, 1
        %s144 = scalar_lea.sflag [#allocation8], %s143
        %s145 = sand.u32 %s57, 1
        %s146 = smul.addr %s145, 8
        %s147 = scalar_lea.vmem [#allocation9], %s146
        %p148 = pneg %p96
        %p149 = pneg %p93
        %p150 = scmp.lt.s32.totalorder %s28, 1
        %s151 = scalar_select %p150, %s28, 1
        %s152 = smul.addr %s151, 8
        %s153 = scalar_lea.vmem %s4, %s152
        %p154 = scmp.lt.s32.totalorder %s28, 1
        %s155 = scalar_select %p154, %s28, 1
        %s156 = smul.addr %s155, 8
        %s157 = scalar_lea.vmem %s4, %s156
        %s158 = smul.u32 %s28, 8
        %v159 = vlaneseq
        %v160 = vand.u32 %v159, 127
        %s161 = sld [smem:[#allocation4 + %s158]]
        %s162 = sld [smem:[#allocation5 + %s158]]
        %s163 = scalar_lea.vmem [#allocation6], %s161
        %v164 = vld [vmem:[%s163] sm:$0x1]
        %165 = vst [vmem:[%s147] sm:$0x1] %v164
        %v166 = vstv %s162
        %vm167 = vcmp.eq.s32.totalorder %v160, %v166
        %v168 = vsel %vm167, %v164, 0.0
        %vm169 = vcmask 1040384
        %v170 = vsel %vm169, %v168, 0.0
        %171 = vadd.xlane.f32.xlu0 %v170
        %v172 = vpop.xlane.xlu0 %171
        %vm173 = vcmask 0
        %174 = vst.msk [vmem:[#allocation2] sm:$0x1] %vm173, %v172
        %s175 = sadd.s32 %s158, 1
        %s176 = sld [smem:[#allocation4 + %s175]]
        %s177 = sld [smem:[#allocation5 + %s175]]
        %s178 = scalar_lea.vmem [#allocation6], %s176
        %v179 = vld [vmem:[%s178] sm:$0x1]
        %180 = vst [vmem:[%s147 + $0x1] sm:$0x1] %v179
        %v181 = vstv %s177
        %vm182 = vcmp.eq.s32.totalorder %v160, %v181
        %v183 = vsel %vm182, %v179, 0.0
        %v184 = vsel %vm169, %v183, 0.0
        %185 = vadd.xlane.f32.xlu0 %v184
        %v186 = vpop.xlane.xlu0 %185
        %187 = vst.msk [vmem:[#allocation2 + $0x1] sm:$0x1] %vm173, %v186
        %s188 = sadd.s32 %s158, 2
        %s189 = sld [smem:[#allocation4 + %s188]]
        %s190 = sld [smem:[#allocation5 + %s188]]
        %s191 = scalar_lea.vmem [#allocation6], %s189
        %v192 = vld [vmem:[%s191] sm:$0x1]
        %193 = vst [vmem:[%s147 + $0x2] sm:$0x1] %v192
        %v194 = vstv %s190
        %vm195 = vcmp.eq.s32.totalorder %v160, %v194
        %v196 = vsel %vm195, %v192, 0.0
        %v197 = vsel %vm169, %v196, 0.0
        %198 = vadd.xlane.f32.xlu0 %v197
        %v199 = vpop.xlane.xlu0 %198
        %200 = vst.msk [vmem:[#allocation2 + $0x2] sm:$0x1] %vm173, %v199
        %s201 = sadd.s32 %s158, 3
        %s202 = sld [smem:[#allocation4 + %s201]]
        %s203 = sld [smem:[#allocation5 + %s201]]
        %s204 = scalar_lea.vmem [#allocation6], %s202
        %v205 = vld [vmem:[%s204] sm:$0x1]
        %206 = vst [vmem:[%s147 + $0x3] sm:$0x1] %v205
        %v207 = vstv %s203
        %vm208 = vcmp.eq.s32.totalorder %v160, %v207
        %v209 = vsel %vm208, %v205, 0.0
        %v210 = vsel %vm169, %v209, 0.0
        %211 = vadd.xlane.f32.xlu0 %v210
        %v212 = vpop.xlane.xlu0 %211
        %213 = vst.msk [vmem:[#allocation2 + $0x3] sm:$0x1] %vm173, %v212
        %s214 = sadd.s32 %s158, 4
        %s215 = sld [smem:[#allocation4 + %s214]]
        %s216 = sld [smem:[#allocation5 + %s214]]
        %s217 = scalar_lea.vmem [#allocation6], %s215
        %v218 = vld [vmem:[%s217] sm:$0x1]
        %219 = vst [vmem:[%s147 + $0x4] sm:$0x1] %v218
        %v220 = vstv %s216
        %vm221 = vcmp.eq.s32.totalorder %v160, %v220
        %v222 = vsel %vm221, %v218, 0.0
        %v223 = vsel %vm169, %v222, 0.0
        %224 = vadd.xlane.f32.xlu0 %v223
        %v225 = vpop.xlane.xlu0 %224
        %226 = vst.msk [vmem:[#allocation2 + $0x4] sm:$0x1] %vm173, %v225
        %s227 = sadd.s32 %s158, 5
        %s228 = sld [smem:[#allocation4 + %s227]]
        %s229 = sld [smem:[#allocation5 + %s227]]
        %s230 = scalar_lea.vmem [#allocation6], %s228
        %v231 = vld [vmem:[%s230] sm:$0x1]
        %232 = vst [vmem:[%s147 + $0x5] sm:$0x1] %v231
        %v233 = vstv %s229
        %vm234 = vcmp.eq.s32.totalorder %v160, %v233
        %v235 = vsel %vm234, %v231, 0.0
        %v236 = vsel %vm169, %v235, 0.0
        %237 = vadd.xlane.f32.xlu0 %v236
        %v238 = vpop.xlane.xlu0 %237
        %239 = vst.msk [vmem:[#allocation2 + $0x5] sm:$0x1] %vm173, %v238
        %s240 = sadd.s32 %s158, 6
        %s241 = sld [smem:[#allocation4 + %s240]]
        %s242 = sld [smem:[#allocation5 + %s240]]
        %s243 = scalar_lea.vmem [#allocation6], %s241
        %v244 = vld [vmem:[%s243] sm:$0x1]
        %245 = vst [vmem:[%s147 + $0x6] sm:$0x1] %v244
        %v246 = vstv %s242
        %vm247 = vcmp.eq.s32.totalorder %v160, %v246
        %v248 = vsel %vm247, %v244, 0.0
        %v249 = vsel %vm169, %v248, 0.0
        %250 = vadd.xlane.f32.xlu0 %v249
        %v251 = vpop.xlane.xlu0 %250
        %252 = vst.msk [vmem:[#allocation2 + $0x6] sm:$0x1] %vm173, %v251
        %s253 = sadd.s32 %s158, 7
        %s254 = sld [smem:[#allocation4 + %s253]]
        %s255 = sld [smem:[#allocation5 + %s253]]
        %s256 = scalar_lea.vmem [#allocation6], %s254
        %v257 = vld [vmem:[%s256] sm:$0x1]
        %258 = vst [vmem:[%s147 + $0x7] sm:$0x1] %v257
        %v259 = vstv %s255
        %vm260 = vcmp.eq.s32.totalorder %v160, %v259
        %v261 = vsel %vm260, %v257, 0.0
        %v262 = vsel %vm169, %v261, 0.0
        %263 = vadd.xlane.f32.xlu0 %v262
        %v264 = vpop.xlane.xlu0 %263
        %265 = vst.msk [vmem:[#allocation2 + $0x7] sm:$0x1] %vm173, %v264
        %v266 = vld [vmem:[%s147] sm:$0xff]
        %267 = vmax.xlane.f32.xlu0 %v266
        %v268 = vpop.xlane.xlu0 %267
        %v269 = vsub.f32 %v266, %v268
        %v270 = vmul.f32 %v269, 1.442695
        %v271 = vpow.pop %v270
        %272 = vadd.xlane.f32.xlu0 %v271
        %v273 = vpop.xlane.xlu0 %272
        %v274 = vlog2.pop %v273
        %v275 = vmul.f32 %v274, 0.6931472
        %v276 = vadd.f32 %v275, %v268
        %v277 = vld [vmem:[#allocation2] sm:$0xff]
        %v278 = vsub.f32 %v276, %v277
        %vm279 = vcmask 7168
        %280 = vst.msk [vmem:[%s157] sm:$0xff] %vm279, %v278
        %s281 = sand.u32 %s57, 1
        %s282 = scalar_lea.sflag [#allocation8], %s281
        %s283 = sand.u32 %s57, 1
        %s284 = smul.addr %s283, 8
        %s285 = scalar_lea.vmem [#allocation9], %s284
        %p286 = scmp.lt.s32.totalorder %s28, 1
        %s287 = scalar_select %p286, %s28, 1
        %s288 = smul.addr %s287, 8
        %s289 = scalar_lea.vmem %s4, %s288
        // Predicated region
        $region29: #{tpu_custom_call.1} parent=23 // pred_check
          %p290 = pneg %p67
        $region30: #{tpu_custom_call.1} parent=23 // pred_check_branch
          %292 = sbr.rel (%p290) target = $region32
        $region31: #{tpu_custom_call.1} parent=23 // pred_region
          %s294 = ssub.s32 128, 128
          %295 = vsyncadd %s282, %s294
          %s296 = smul.addr %s28, 128
          %s297 = scalar_lea.hbm %s3, %s296
          %s299 = sshll.u32 %s285, 4
          %s300 = int_to_ptr.vmem [resolvable:$true] %s299
          %302 = dma.vmem_to_hbm [thread:$0]  %s300, 128, %s297, %s282
        $region32: #{tpu_custom_call.1} parent=23 // pred_fallthru
          _
        // Predicated region
        $region33: #{tpu_custom_call.1} parent=23 // pred_check
          %p303 = pneg %p93
        $region34: #{tpu_custom_call.1} parent=23 // pred_check_branch
          %305 = sbr.rel (%p303) target = $region36
        $region35: #{tpu_custom_call.1} parent=23 // pred_region
          _
        $region36: #{tpu_custom_call.1} parent=23 // pred_fallthru
          _
      $region24: #{tpu_custom_call.1} parent=5 // pred_fallthru
        _
      %p306 = scmp.le.s32.totalorder 2, %s23
      // Predicated region
      $region37: #{tpu_custom_call.1} parent=5 // pred_check
        %p307 = pneg %p306
      $region38: #{tpu_custom_call.1} parent=5 // pred_check_branch
        %309 = sbr.rel (%p307) target = $region40
      $region39: #{tpu_custom_call.1} parent=5 // pred_region
        %s310 = ssub.s32 %s23, 2
        // Predicated region
        $region41: #{tpu_custom_call.1} parent=39 // pred_check
          %p311 = pneg %p73
        $region42: #{tpu_custom_call.1} parent=39 // pred_check_branch
          %313 = sbr.rel (%p311) target = $region44
        $region43: #{tpu_custom_call.1} parent=39 // pred_region
          %s314 = sand.u32 %s58, 1
          %s315 = scalar_lea.sflag [#allocation8], %s314
          %s316 = sand.u32 %s58, 1
          %s317 = smul.addr %s316, 8
          %s318 = scalar_lea.vmem [#allocation9], %s317
          %319 = dma.done %s315, 128
        $region44: #{tpu_custom_call.1} parent=39 // pred_fallthru
          _
        // Predicated region
        $region45: #{tpu_custom_call.1} parent=39 // pred_check
          %p320 = pneg %p99
        $region46: #{tpu_custom_call.1} parent=39 // pred_check_branch
          %322 = sbr.rel (%p320) target = $region48
        $region47: #{tpu_custom_call.1} parent=39 // pred_region
          %p323 = scmp.lt.s32.totalorder %s29, 1
          %s324 = scalar_select %p323, %s29, 1
          %s325 = smul.addr %s324, 8
          %s326 = scalar_lea.vmem %s4, %s325
        $region48: #{tpu_custom_call.1} parent=39 // pred_fallthru
          _
      $region40: #{tpu_custom_call.1} parent=5 // pred_fallthru
        _
    $region6: #{tpu_custom_call.1} parent=1 // loop_footer
      %s27 = sadd.s32 1, %s23
    $region7: #{tpu_custom_call.1} parent=1 // loop_footer_branch
      %22 = sbr.rel target = $region3
    $region8: #{tpu_custom_call.1} parent=1 // loop_exit
      _
    %327 = vsyncpa [#allocation7], 1
    %s328 = scalar_lea.sflag [#allocation7], 1
    %329 = vsyncpa %s328, 1
    %330 = vsyncpa [#allocation8], 1
    %s331 = scalar_lea.sflag [#allocation8], 1
    %332 = vsyncpa %s331, 1

</llo_original>
